<compile_context>
chip_gen: v5e
topology: v5e:2x2
jax: 0.10.0
libtpu: 0.0.40
codegen_flags: <defaults>
</compile_context>

<pallas_src>
import math

import jax
import jax.numpy as jnp
from jax.experimental import pallas as pl
from jax.experimental.pallas import tpu as pltpu

_SQRT2_INV = 1.0 / math.sqrt(2.0)


def _ffn_kernel(x_ref, w1_ref, b1_ref, w2_ref, b2_ref, out_ref):
    """One (TILE_N, E) row tile x one TILE_H hidden chunk (reduction over chunks).

    Accumulates directly into the resident f32 output block (no scratch).
    """
    k = pl.program_id(1)

    @pl.when(k == 0)
    def _():
        out_ref[...] = jnp.zeros_like(out_ref)

    # bf16 MXU inputs (x already bf16 from the wrapper), f32 accumulation.
    h = jnp.dot(x_ref[...], w1_ref[...], preferred_element_type=jnp.float32)
    h = h + b1_ref[...]
    # Exact (erf) GELU, fused bias-add + activation + bf16 cast in one pass
    # over the (TILE_N, TILE_H) intermediate; kept in f32 (v5e-safe).
    h = 0.5 * h * (1.0 + jax.lax.erf(h * jnp.float32(_SQRT2_INV)))
    out_ref[...] += jnp.dot(h.astype(jnp.bfloat16), w2_ref[...],
                            preferred_element_type=jnp.float32)

    @pl.when(k == pl.num_programs(1) - 1)
    def _():
        out_ref[...] = out_ref[...] + b2_ref[...]
    # TODO(synk): nn.Dropout(p_dropout) is identity in eval mode; training-mode
    # dropout not implemented.


def _round_up(a, m):
    return (a + m - 1) // m * m


def _chip_config():
    """Best-effort per-generation tiling config; conservative on failure."""
    kind = ""
    try:
        kind = jax.devices()[0].device_kind.lower()
    except Exception:
        pass
    try:
        vmem_cap = int(pltpu.get_tpu_info().vmem_capacity_bytes)
    except Exception:
        vmem_cap = 64 * 1024 * 1024  # assume the smallest (v7x per-TC VMEM)

    if "v5" in kind:
        tile_n, num_tc = 256, 1        # v5e: roofline crossover ~240 rows
    elif "v6" in kind:
        tile_n, num_tc = 1024, 1       # v6e: crossover ~600-640; 128 MiB VMEM
    elif "7" in kind:
        tile_n, num_tc = 512, 2        # v7x: crossover ~310; 64 MiB cap; 2 TCs
    else:
        tile_n = 512
        num_tc = 2 if vmem_cap <= 64 * 1024 * 1024 else 1

    # Leave headroom for the compiler's internal scratch (h intermediates etc.).
    vmem_limit = max(32 * 1024 * 1024,
                     min(vmem_cap - (8 << 20), int(vmem_cap * 0.88)))
    return tile_n, num_tc, vmem_limit


def feed_forward(x, params, *, tile_n=None, vmem_limit_bytes=None):
    """x: (..., E) float array.  params: w1 (E,H), b1 (1,H), w2 (H,E), b2 (1,E)."""
    orig_shape = x.shape
    orig_dtype = x.dtype
    E = orig_shape[-1]
    H = params["w1"].shape[1]
    N = 1
    for d in orig_shape[:-1]:
        N *= d

    cfg_tile_n, num_tc, cfg_vmem = _chip_config()
    if tile_n is None:
        tile_n = cfg_tile_n
    if vmem_limit_bytes is None:
        vmem_limit_bytes = cfg_vmem
    vmem_limit_bytes = int(vmem_limit_bytes)

    # Cast x to bf16 ONCE here (revisited across hidden chunks inside the kernel).
    x2 = x.reshape(N, E).astype(jnp.bfloat16)

    # --- Hidden-dim padding & chunking: lane-dense (multiple of 128). -------
    H_pad = _round_up(H, 128)
    w1 = params["w1"].astype(jnp.bfloat16)
    w2 = params["w2"].astype(jnp.bfloat16)
    b1 = params["b1"].astype(jnp.float32).reshape(1, H)
    b2 = params["b2"].astype(jnp.float32).reshape(1, E)
    if H_pad != H:
        # Zero-padded hidden units: GELU(0 + 0) = 0 and padded w2 rows are 0,
        # so they contribute nothing to the output.
        w1 = jnp.pad(w1, ((0, 0), (0, H_pad - H)))
        b1 = jnp.pad(b1, ((0, 0), (0, H_pad - H)))
        w2 = jnp.pad(w2, ((0, H_pad - H), (0, 0)))

    TILE_H = 128
    for cand in (512, 256, 128):
        if H_pad % cand == 0:
            TILE_H = cand
            break

    # --- Row tile: multiple of 8 sublanes, fit in the per-chip VMEM budget. --
    TILE_N = min(tile_n, _round_up(N, 8))

    def _vmem_needed(tn):
        # Double-buffered pipeline buffers + compiler internal scratch for the
        # (tn, TILE_H) f32 GELU intermediate (+ temps + bf16 copy).
        buffers = 2 * (tn * E * 2          # x tile (bf16)
                       + tn * E * 4        # out tile (f32 accumulator)
                       + E * TILE_H * 2    # w1 chunk (bf16)
                       + TILE_H * 4        # b1 chunk (f32)
                       + TILE_H * E * 2    # w2 chunk (bf16)
                       + E * 4)            # b2 (f32)
        scratch = tn * TILE_H * 10
        return buffers + scratch

    while TILE_N > 8 and _vmem_needed(TILE_N) > vmem_limit_bytes:
        TILE_N = max(8, _round_up(TILE_N // 2, 8))

    # On 2-TC chips (v7x), grid axis 0 ("parallel") is what shards across cores:
    # make sure there are at least two row tiles when N allows it.
    if num_tc > 1 and pl.cdiv(N, TILE_N) < 2 and N >= 16:
        TILE_N = _round_up(pl.cdiv(N, 2), 8)

    N_pad = _round_up(N, TILE_N)
    if N_pad != N:
        x2 = jnp.pad(x2, ((0, N_pad - N), (0, 0)))

    grid = (N_pad // TILE_N, H_pad // TILE_H)
    n_row_tiles = grid[0]

    in_specs = [
        pl.BlockSpec((TILE_N, E), lambda i, k: (i, 0)),    # x row tile (resident across k)
        pl.BlockSpec((E, TILE_H), lambda i, k: (0, k)),    # w1 column chunk
        pl.BlockSpec((1, TILE_H), lambda i, k: (0, k)),    # b1 chunk
        pl.BlockSpec((TILE_H, E), lambda i, k: (k, 0)),    # w2 row chunk
        pl.BlockSpec((1, E), lambda i, k: (0, 0)),         # b2
    ]
    out_spec = pl.BlockSpec((TILE_N, E), lambda i, k: (i, 0))  # resident accumulator

    cost = pl.CostEstimate(
        flops=4 * N_pad * E * H_pad,        # two matmuls: 2*N*E*H each
        transcendentals=N_pad * H_pad,      # erf
        bytes_accessed=(N_pad * E * 2       # x read (bf16)
                        + N_pad * E * 4     # out write (f32)
                        # weights/biases re-streamed once per row tile:
                        + n_row_tiles * (E * H_pad * 2 + H_pad * E * 2
                                         + H_pad * 4 + E * 4)),
    )

    out = pl.pallas_call(
        _ffn_kernel,
        out_shape=jax.ShapeDtypeStruct((N_pad, E), jnp.float32),
        grid=grid,
        in_specs=in_specs,
        out_specs=out_spec,
        compiler_params=pltpu.CompilerParams(
            dimension_semantics=("parallel", "arbitrary"),
            vmem_limit_bytes=vmem_limit_bytes,
        ),
        cost_estimate=cost,
    )(x2, w1, b1, w2, b2)

    return out[:N].reshape(orig_shape).astype(orig_dtype)


def init_params(key, embed_dim, mlp_ratio):
    """Deterministic synthetic parameters (PyTorch-Linear-style uniform ranges)."""
    E, H = embed_dim, embed_dim * mlp_ratio
    k1, k2 = jax.random.split(key)

    def lin(k, fan_in, fan_out):
        bound = 1.0 / math.sqrt(fan_in)
        kw, kb = jax.random.split(k)
        w = jax.random.uniform(kw, (fan_in, fan_out), jnp.float32, -bound, bound)
        b = jax.random.uniform(kb, (1, fan_out), jnp.float32, -bound, bound)
        return w, b

    w1, b1 = lin(k1, E, H)   # ffwd up
    w2, b2 = lin(k2, H, E)   # ffwd down
    return {"w1": w1, "b1": b1, "w2": w2, "b2": b2}


def reference_ffn(x, params):
    """Pure-JAX f32 reference mirroring the PyTorch forward (eval mode)."""
    h = x @ params["w1"] + params["b1"]
    h = 0.5 * h * (1.0 + jax.scipy.special.erf(h / math.sqrt(2.0)))
    return h @ params["w2"] + params["b2"]


if __name__ == "__main__":
    B, S, E = 2, 8, 128
    mlp_ratio, p_dropout = 4, 0.1  # p_dropout unused (eval mode => identity)

    key = jax.random.PRNGKey(0)
    kx, kp = jax.random.split(key)
    x = jax.random.normal(kx, (B, S, E), jnp.float32)
    params = init_params(kp, E, mlp_ratio)

    out = feed_forward(x, params)
    out = jax.block_until_ready(out)

    ref = reference_ffn(x, params)
    assert out.shape == (B, S, E)
    # bf16 MXU inputs (f32 accumulate) vs f32 reference -> looser tolerance.
    assert jnp.allclose(out, ref, atol=5e-2, rtol=5e-2), float(jnp.max(jnp.abs(out - ref)))
    print("KERNEL_OK")
</pallas_src>

<mosaic_0001>
module attributes {stable_mosaic.version = 11 : i64} {
  func.func @_ffn_kernel(%arg0: i32, %arg1: i32, %arg2: memref<8x128xbf16, #tpu.memory_space<vmem>>, %arg3: memref<128x512xbf16, #tpu.memory_space<vmem>>, %arg4: memref<1x512xf32, #tpu.memory_space<vmem>>, %arg5: memref<512x128xbf16, #tpu.memory_space<vmem>>, %arg6: memref<1x128xf32, #tpu.memory_space<vmem>>, %arg7: memref<8x128xf32, #tpu.memory_space<vmem>>) attributes {dimension_semantics = [#tpu.dimension_semantics<parallel>, #tpu.dimension_semantics<arbitrary>], iteration_bounds = array<i64: 2, 1>, scalar_prefetch = 0 : i64, scratch_operands = 0 : i64, tpu.core_type = #tpu.core_type<tc>, window_params = [{transform_indices = @transform_0, window_bounds = array<i64: 8, 128>}, {transform_indices = @transform_1, window_bounds = array<i64: 128, 512>}, {transform_indices = @transform_2, window_bounds = array<i64: 1, 512>}, {transform_indices = @transform_3, window_bounds = array<i64: 512, 128>}, {pipeline_mode = #tpu.pipeline_mode<synchronous>, transform_indices = @transform_4, window_bounds = array<i64: 1, 128>}, {transform_indices = @transform_5, window_bounds = array<i64: 8, 128>}]} {
    %c0_i32 = arith.constant 0 : i32
    %0 = arith.cmpi eq, %arg1, %c0_i32 : i32
    %1 = arith.extui %0 : i1 to i32
    %c0_i32_0 = arith.constant 0 : i32
    %2 = arith.cmpi ne, %1, %c0_i32_0 : i32
    scf.if %2 {
      %cst_18 = arith.constant 0.000000e+00 : f32
      %26 = vector.broadcast %cst_18 : f32 to vector<8x128xf32>
      %c0_19 = arith.constant 0 : index
      %c0_20 = arith.constant 0 : index
      %27 = vector.load %arg7[%c0_19, %c0_20] : memref<8x128xf32, #tpu.memory_space<vmem>>, vector<8x128xf32>
      tpu.vector_store %arg7[%c0_19, %c0_20], %26 {strides = array<i32>} : memref<8x128xf32, #tpu.memory_space<vmem>>, vector<8x128xf32>,
    } else {
    }
    %c0 = arith.constant 0 : index
    %c0_1 = arith.constant 0 : index
    %3 = vector.load %arg2[%c0, %c0_1] : memref<8x128xbf16, #tpu.memory_space<vmem>>, vector<8x128xbf16>
    %c0_2 = arith.constant 0 : index
    %c0_3 = arith.constant 0 : index
    %4 = vector.load %arg3[%c0_2, %c0_3] : memref<128x512xbf16, #tpu.memory_space<vmem>>, vector<128x512xbf16>
    %cst = arith.constant dense<0.000000e+00> : vector<8x512xf32>
    %5 = tpu.matmul %3, %4, %cst {dimension_numbers = #tpu.dot_dimension_numbers<[1], [0], [0], [1], [0, 0, 1, 1], [], []>} : vector<8x128xbf16>, vector<128x512xbf16>, vector<8x512xf32> -> vector<8x512xf32>
    %c0_4 = arith.constant 0 : index
    %c0_5 = arith.constant 0 : index
    %6 = vector.load %arg4[%c0_4, %c0_5] : memref<1x512xf32, #tpu.memory_space<vmem>>, vector<1x512xf32>
    %7 = vector.broadcast %6 : vector<1x512xf32> to vector<8x512xf32>
    %8 = arith.addf %5, %7 : vector<8x512xf32>
    %cst_6 = arith.constant 5.000000e-01 : f32
    %9 = vector.broadcast %cst_6 : f32 to vector<8x512xf32>
    %10 = arith.mulf %9, %8 : vector<8x512xf32>
    %cst_7 = arith.constant 0.707106769 : f32
    %11 = vector.broadcast %cst_7 : f32 to vector<8x512xf32>
    %12 = arith.mulf %8, %11 : vector<8x512xf32>
    %13 = math.erf %12 : vector<8x512xf32>
    %cst_8 = arith.constant 1.000000e+00 : f32
    %14 = vector.broadcast %cst_8 : f32 to vector<8x512xf32>
    %15 = arith.addf %14, %13 : vector<8x512xf32>
    %16 = arith.mulf %10, %15 : vector<8x512xf32>
    %c0_9 = arith.constant 0 : index
    %c0_10 = arith.constant 0 : index
    %17 = vector.load %arg7[%c0_9, %c0_10] : memref<8x128xf32, #tpu.memory_space<vmem>>, vector<8x128xf32>
    %18 = arith.truncf %16 : vector<8x512xf32> to vector<8x512xbf16>
    %c0_11 = arith.constant 0 : index
    %c0_12 = arith.constant 0 : index
    %19 = vector.load %arg5[%c0_11, %c0_12] : memref<512x128xbf16, #tpu.memory_space<vmem>>, vector<512x128xbf16>
    %cst_13 = arith.constant dense<0.000000e+00> : vector<8x128xf32>
    %20 = tpu.matmul %18, %19, %cst_13 {dimension_numbers = #tpu.dot_dimension_numbers<[1], [0], [0], [1], [0, 0, 1, 1], [], []>} : vector<8x512xbf16>, vector<512x128xbf16>, vector<8x128xf32> -> vector<8x128xf32>
    %21 = arith.addf %17, %20 : vector<8x128xf32>
    %c0_14 = arith.constant 0 : index
    %c0_15 = arith.constant 0 : index
    %22 = vector.load %arg7[%c0_14, %c0_15] : memref<8x128xf32, #tpu.memory_space<vmem>>, vector<8x128xf32>
    tpu.vector_store %arg7[%c0_14, %c0_15], %21 {strides = array<i32>} : memref<8x128xf32, #tpu.memory_space<vmem>>, vector<8x128xf32>,
    %c0_i32_16 = arith.constant 0 : i32
    %23 = arith.cmpi eq, %arg1, %c0_i32_16 : i32
    %24 = arith.extui %23 : i1 to i32
    %c0_i32_17 = arith.constant 0 : i32
    %25 = arith.cmpi ne, %24, %c0_i32_17 : i32
    scf.if %25 {
      %c0_18 = arith.constant 0 : index
      %c0_19 = arith.constant 0 : index
      %26 = vector.load %arg7[%c0_18, %c0_19] : memref<8x128xf32, #tpu.memory_space<vmem>>, vector<8x128xf32>
      %c0_20 = arith.constant 0 : index
      %c0_21 = arith.constant 0 : index
      %27 = vector.load %arg6[%c0_20, %c0_21] : memref<1x128xf32, #tpu.memory_space<vmem>>, vector<1x128xf32>
      %28 = vector.broadcast %27 : vector<1x128xf32> to vector<8x128xf32>
      %29 = arith.addf %26, %28 : vector<8x128xf32>
      %c0_22 = arith.constant 0 : index
      %c0_23 = arith.constant 0 : index
      %30 = vector.load %arg7[%c0_22, %c0_23] : memref<8x128xf32, #tpu.memory_space<vmem>>, vector<8x128xf32>
      tpu.vector_store %arg7[%c0_22, %c0_23], %29 {strides = array<i32>} : memref<8x128xf32, #tpu.memory_space<vmem>>, vector<8x128xf32>,
    } else {
    }
    return
  }
  func.func @transform_0(%arg0: i32, %arg1: i32) -> (i32, i32) {
    %c0_i32 = arith.constant 0 : i32
    %c0_i32_0 = arith.constant 0 : i32
    return %arg0, %c0_i32 : i32, i32
  }
  func.func @transform_1(%arg0: i32, %arg1: i32) -> (i32, i32) {
    %c0_i32 = arith.constant 0 : i32
    %c0_i32_0 = arith.constant 0 : i32
    return %c0_i32, %arg1 : i32, i32
  }
  func.func @transform_2(%arg0: i32, %arg1: i32) -> (i32, i32) {
    %c0_i32 = arith.constant 0 : i32
    %c0_i32_0 = arith.constant 0 : i32
    return %c0_i32, %arg1 : i32, i32
  }
  func.func @transform_3(%arg0: i32, %arg1: i32) -> (i32, i32) {
    %c0_i32 = arith.constant 0 : i32
    %c0_i32_0 = arith.constant 0 : i32
    return %arg1, %c0_i32 : i32, i32
  }
  func.func @transform_4(%arg0: i32, %arg1: i32) -> (i32, i32) {
    %c0_i32 = arith.constant 0 : i32
    %c0_i32_0 = arith.constant 0 : i32
    %c0_i32_1 = arith.constant 0 : i32
    return %c0_i32, %c0_i32_0 : i32, i32
  }
  func.func @transform_5(%arg0: i32, %arg1: i32) -> (i32, i32) {
    %c0_i32 = arith.constant 0 : i32
    %c0_i32_0 = arith.constant 0 : i32
    return %arg0, %c0_i32 : i32, i32
  }
}

</mosaic_0001>

<llo_original>
// kernel: tpu_custom_call.1
$region0: #{tpu_custom_call.1}
  #allocation0 [shape = 'u32[]', space=smem, size = 0x4, offset = 0x4, fixed_abs, tag = 'smem constant byte address 0x4 - core index']
  #allocation1 [shape = 'u32[72,128]{1,0:T(1,128)}', space=vmem, size = 0x9000, scoped, tag = 'internal scratch']
  %s0 = inlined_call_operand.hbm [shape: bf16[16,128], index: 0, kind: input, shape index: {}]
  %s1 = inlined_call_operand.hbm [shape: bf16[128,512], index: 1, kind: input, shape index: {}]
  %s2 = inlined_call_operand.hbm [shape: f32[1,512], index: 2, kind: input, shape index: {}]
  %s3 = inlined_call_operand.hbm [shape: bf16[512,128], index: 3, kind: input, shape index: {}]
  %s4 = inlined_call_operand.vmem [shape: f32[1,128], index: 4, kind: input, shape index: {}]
  %s5 = inlined_call_operand.hbm [shape: f32[16,128], index: 5, kind: output, shape index: {}]
  %s6 = sld [smem:[#allocation0]]
  $region77: #{tpu_custom_call.1} parent=0
    _
  %s8 = ssub.s32 1, %s6
  %s9 = scalar_select 0, %s8, %s6
  $region1: #{tpu_custom_call.1} parent=0
    #allocation2 [shape = 'u8[4096]{0}', space=vmem, size = 0x1000, scoped, tag = 'input window, operand 0']
    #allocation3 [shape = 's32[2]{0}', space=sflag, size = 0x8, scoped, tag = 'scoped memory for tpu_custom_call.1']
    #allocation4 [shape = 's32[2]{0}', space=sflag, size = 0x8, scoped, tag = 'scoped memory for tpu_custom_call.1']
    #allocation5 [shape = 'u8[131072]{0}', space=vmem, size = 0x20000, scoped, tag = 'input window, operand 1, single buffered']
    #allocation6 [shape = 's32[1]{0}', space=sflag, size = 0x4, scoped, tag = 'scoped memory for tpu_custom_call.1']
    #allocation7 [shape = 'u8[2048]{0}', space=vmem, size = 0x800, scoped, tag = 'input window, operand 2, single buffered']
    #allocation8 [shape = 'u8[131072]{0}', space=vmem, size = 0x20000, scoped, tag = 'input window, operand 3, single buffered']
    #allocation9 [shape = 's32[1]{0}', space=sflag, size = 0x4, scoped, tag = 'scoped memory for tpu_custom_call.1']
    #allocation10 [shape = 'u8[8192]{0}', space=vmem, size = 0x2000, scoped, tag = 'output window, operand 0']
    %10 = vsyncpa [#allocation3], 0
    %s11 = scalar_lea.sflag [#allocation3], 1
    %12 = vsyncpa %s11, 0
    %13 = vsyncpa [#allocation6], 0
    %14 = vsyncpa [#allocation9], 0
    %15 = vsyncpa [#allocation4], 0
    %s16 = scalar_lea.sflag [#allocation4], 1
    %17 = vsyncpa %s16, 0
    loop: start=0, step=1, limit=4
    $region2: #{tpu_custom_call.1} parent=1 // loop_pre_header
      _
    $region3: #{tpu_custom_call.1} parent=1 // loop_header
      %s19 = sphi 0, %s23
      %p20 = scmp.ge.s32.totalorder %s19, 4
      %s26 = sphi 0, %s38
      %s27 = sphi 0, %s34
      %s28 = sphi 0, %s26
      %s29 = sphi 0, %s27
      %s30 = sphi 0, %s28
      %s31 = sphi 0, %s29
      %s41 = sphi 0, %s43
      %s44 = sphi 0, %s41
      %s45 = sphi 0, %s44
      %s61 = sphi 0, %s45
      %s67 = sphi 0, %s69
      %s70 = sphi 0, %s67
      %s71 = sphi 0, %s70
      %s87 = sphi 0, %s71
      %s93 = sphi 0, %s95
      %s96 = sphi 0, %s93
      %s97 = sphi 0, %s96
      %s113 = sphi 0, %s97
      %s119 = sphi 0, %s121
      %s122 = sphi 0, %s119
      %s123 = sphi 0, %s122
      %s139 = sphi 0, %s123
      %s143 = sphi 0, %s143
      %s145 = sphi 0, %s143
      %s146 = sphi 0, %s145
      %s160 = sphi 0, %s146
      %s166 = sphi 0, %s168
      %s169 = sphi 0, %s166
      %s170 = sphi 0, %s169
      %s186 = sphi 0, %s170
    $region4: #{tpu_custom_call.1} parent=1 // loop_header_branch
      %22 = sbr.rel (%p20) target = $region8
    $region5: #{tpu_custom_call.1} parent=1 // loop_body
      %s24 = ssub.s32 %s19, 1
      %s25 = ssub.s32 %s19, 2
      %s32 = sadd.s32 1, %s27
      %p33 = scmp.ge.s32.totalorder %s32, 1
      %s34 = scalar_select %p33, 0, %s32
      %s35 = sadd.s32 1, %s26
      %s36 = scalar_select %p33, %s35, %s26
      %p37 = scmp.ge.s32.totalorder %s36, 2
      %s38 = scalar_select %p37, 0, %s36
      %s39 = ssub.s32 %s26, %s38
      %p40 = scmp.eq.s32.totalorder %s39, 0
      %s42 = sadd.s32 %s41, 1
      %s43 = scalar_select %p40, %s41, %s42
      %p46 = pneg %p40
      %p47 = scmp.eq.s32.totalorder %s19, 1
      %p48 = por %p46, %p47
      %p49 = scmp.ne.s32.totalorder %s41, %s44
      %p50 = scmp.eq.s32.totalorder %s19, 0
      %p51 = por %p49, %p50
      %p52 = scmp.ne.s32.totalorder %s41, %s44
      %p53 = scmp.eq.s32.totalorder %s24, 1
      %p54 = por %p52, %p53
      %p55 = scmp.ne.s32.totalorder %s44, %s45
      %p56 = scmp.eq.s32.totalorder %s24, 0
      %p57 = por %p55, %p56
      %p58 = scmp.ne.s32.totalorder %s44, %s45
      %p59 = scmp.eq.s32.totalorder %s25, 1
      %p60 = por %p58, %p59
      %p62 = scmp.ne.s32.totalorder %s45, %s61
      %p63 = scmp.eq.s32.totalorder %s25, 0
      %p64 = por %p62, %p63
      %s65 = ssub.s32 %s27, %s34
      %p66 = scmp.eq.s32.totalorder %s65, 0
      %s68 = sadd.s32 %s67, 1
      %s69 = scalar_select %p66, %s67, %s68
      %p72 = pneg %p66
      %p73 = scmp.eq.s32.totalorder %s19, 1
      %p74 = por %p72, %p73
      %p75 = scmp.ne.s32.totalorder %s67, %s70
      %p76 = scmp.eq.s32.totalorder %s19, 0
      %p77 = por %p75, %p76
      %p78 = scmp.ne.s32.totalorder %s67, %s70
      %p79 = scmp.eq.s32.totalorder %s24, 1
      %p80 = por %p78, %p79
      %p81 = scmp.ne.s32.totalorder %s70, %s71
      %p82 = scmp.eq.s32.totalorder %s24, 0
      %p83 = por %p81, %p82
      %p84 = scmp.ne.s32.totalorder %s70, %s71
      %p85 = scmp.eq.s32.totalorder %s25, 1
      %p86 = por %p84, %p85
      %p88 = scmp.ne.s32.totalorder %s71, %s87
      %p89 = scmp.eq.s32.totalorder %s25, 0
      %p90 = por %p88, %p89
      %s91 = ssub.s32 %s27, %s34
      %p92 = scmp.eq.s32.totalorder %s91, 0
      %s94 = sadd.s32 %s93, 1
      %s95 = scalar_select %p92, %s93, %s94
      %p98 = pneg %p92
      %p99 = scmp.eq.s32.totalorder %s19, 1
      %p100 = por %p98, %p99
      %p101 = scmp.ne.s32.totalorder %s93, %s96
      %p102 = scmp.eq.s32.totalorder %s19, 0
      %p103 = por %p101, %p102
      %p104 = scmp.ne.s32.totalorder %s93, %s96
      %p105 = scmp.eq.s32.totalorder %s24, 1
      %p106 = por %p104, %p105
      %p107 = scmp.ne.s32.totalorder %s96, %s97
      %p108 = scmp.eq.s32.totalorder %s24, 0
      %p109 = por %p107, %p108
      %p110 = scmp.ne.s32.totalorder %s96, %s97
      %p111 = scmp.eq.s32.totalorder %s25, 1
      %p112 = por %p110, %p111
      %p114 = scmp.ne.s32.totalorder %s97, %s113
      %p115 = scmp.eq.s32.totalorder %s25, 0
      %p116 = por %p114, %p115
      %s117 = ssub.s32 %s27, %s34
      %p118 = scmp.eq.s32.totalorder %s117, 0
      %s120 = sadd.s32 %s119, 1
      %s121 = scalar_select %p118, %s119, %s120
      %p124 = pneg %p118
      %p125 = scmp.eq.s32.totalorder %s19, 1
      %p126 = por %p124, %p125
      %p127 = scmp.ne.s32.totalorder %s119, %s122
      %p128 = scmp.eq.s32.totalorder %s19, 0
      %p129 = por %p127, %p128
      %p130 = scmp.ne.s32.totalorder %s119, %s122
      %p131 = scmp.eq.s32.totalorder %s24, 1
      %p132 = por %p130, %p131
      %p133 = scmp.ne.s32.totalorder %s122, %s123
      %p134 = scmp.eq.s32.totalorder %s24, 0
      %p135 = por %p133, %p134
      %p136 = scmp.ne.s32.totalorder %s122, %s123
      %p137 = scmp.eq.s32.totalorder %s25, 1
      %p138 = por %p136, %p137
      %p140 = scmp.ne.s32.totalorder %s123, %s139
      %p141 = scmp.eq.s32.totalorder %s25, 0
      %p142 = por %p140, %p141
      %s144 = sadd.s32 %s143, 1
      %p147 = scmp.eq.s32.totalorder %s19, 1
      %p148 = scmp.ne.s32.totalorder %s143, %s145
      %p149 = scmp.eq.s32.totalorder %s19, 0
      %p150 = por %p148, %p149
      %p151 = scmp.ne.s32.totalorder %s143, %s145
      %p152 = scmp.eq.s32.totalorder %s24, 1
      %p153 = por %p151, %p152
      %p154 = scmp.ne.s32.totalorder %s145, %s146
      %p155 = scmp.eq.s32.totalorder %s24, 0
      %p156 = por %p154, %p155
      %p157 = scmp.ne.s32.totalorder %s145, %s146
      %p158 = scmp.eq.s32.totalorder %s25, 1
      %p159 = por %p157, %p158
      %p161 = scmp.ne.s32.totalorder %s146, %s160
      %p162 = scmp.eq.s32.totalorder %s25, 0
      %p163 = por %p161, %p162
      %s164 = ssub.s32 %s26, %s38
      %p165 = scmp.eq.s32.totalorder %s164, 0
      %s167 = sadd.s32 %s166, 1
      %s168 = scalar_select %p165, %s166, %s167
      %p171 = pneg %p165
      %p172 = scmp.eq.s32.totalorder %s19, 1
      %p173 = por %p171, %p172
      %p174 = scmp.ne.s32.totalorder %s166, %s169
      %p175 = scmp.eq.s32.totalorder %s19, 0
      %p176 = por %p174, %p175
      %p177 = scmp.ne.s32.totalorder %s166, %s169
      %p178 = scmp.eq.s32.totalorder %s24, 1
      %p179 = por %p177, %p178
      %p180 = scmp.ne.s32.totalorder %s169, %s170
      %p181 = scmp.eq.s32.totalorder %s24, 0
      %p182 = por %p180, %p181
      %p183 = scmp.ne.s32.totalorder %s169, %s170
      %p184 = scmp.eq.s32.totalorder %s25, 1
      %p185 = por %p183, %p184
      %p187 = scmp.ne.s32.totalorder %s170, %s186
      %p188 = scmp.eq.s32.totalorder %s25, 0
      %p189 = por %p187, %p188
      %p190 = scmp.le.s32.totalorder 1, %s19
      %p191 = scmp.lt.s32.totalorder %s19, 3
      %p192 = pnand %p190, %p191
      %p193 = pneg %p192
      // Predicated region
      $region9: #{tpu_custom_call.1} parent=5 // pred_check
        _
      $region10: #{tpu_custom_call.1} parent=5 // pred_check_branch
        %195 = sbr.rel (%p192) target = $region12
      $region11: #{tpu_custom_call.1} parent=5 // pred_region
        %s196 = ssub.s32 %s19, 1
        // Predicated region
        $region13: #{tpu_custom_call.1} parent=11 // pred_check
          %p197 = pneg %p83
        $region14: #{tpu_custom_call.1} parent=11 // pred_check_branch
          %199 = sbr.rel (%p197) target = $region16
        $region15: #{tpu_custom_call.1} parent=11 // pred_region
          %s200 = smul.u32 4, %s29
          %202 = vsyncadd [#allocation6], 0
          %s203 = smul.addr %s200, 4
          %s204 = scalar_lea.hbm %s1, %s203
          %s205 = sshll.u32 %s204, 4
          %s206 = int_to_ptr.hbm [resolvable:$true] %s205
          %s207 = sshll.u32 [#allocation5], 4
          %s208 = int_to_ptr.vmem [resolvable:$true] %s207
          %213 = dma.hbm_to_vmem [thread:$0]  %s206, 4096, %s208, [#allocation6], 256, 256, 16
        $region16: #{tpu_custom_call.1} parent=11 // pred_fallthru
          _
        // Predicated region
        $region17: #{tpu_custom_call.1} parent=11 // pred_check
          %p214 = pneg %p109
        $region18: #{tpu_custom_call.1} parent=11 // pred_check_branch
          %216 = sbr.rel (%p214) target = $region20
        $region19: #{tpu_custom_call.1} parent=11 // pred_region
          %s217 = smul.u32 4, %s29
          %219 = vsyncadd [#allocation6], 0
          %s220 = scalar_lea.hbm %s2, %s217
          %s222 = sshll.u32 %s220, 4
          %s223 = int_to_ptr.hbm [resolvable:$true] %s222
          %s224 = sshll.u32 [#allocation7], 4
          %s225 = int_to_ptr.vmem [resolvable:$true] %s224
          %227 = dma.hbm_to_vmem [thread:$0]  %s223, 64, %s225, [#allocation6]
        $region20: #{tpu_custom_call.1} parent=11 // pred_fallthru
          _
        // Predicated region
        $region21: #{tpu_custom_call.1} parent=11 // pred_check
          %p228 = pneg %p135
        $region22: #{tpu_custom_call.1} parent=11 // pred_check_branch
          %230 = sbr.rel (%p228) target = $region24
        $region23: #{tpu_custom_call.1} parent=11 // pred_region
          %s231 = smul.u32 64, %s29
          %233 = vsyncadd [#allocation9], 0
          %s234 = smul.addr %s231, 4
          %s235 = scalar_lea.hbm %s3, %s234
          %s236 = sshll.u32 %s235, 4
          %s237 = int_to_ptr.hbm [resolvable:$true] %s236
          %s238 = sshll.u32 [#allocation8], 4
          %s239 = int_to_ptr.vmem [resolvable:$true] %s238
          %244 = dma.hbm_to_vmem [thread:$0]  %s237, 4096, %s239, [#allocation9], 64, 64, 4
        $region24: #{tpu_custom_call.1} parent=11 // pred_fallthru
          _
        // Predicated region
        $region25: #{tpu_custom_call.1} parent=11 // pred_check
          %p245 = pneg %p156
        $region26: #{tpu_custom_call.1} parent=11 // pred_check_branch
          %247 = sbr.rel (%p245) target = $region28
        $region27: #{tpu_custom_call.1} parent=11 // pred_region
          _
        $region28: #{tpu_custom_call.1} parent=11 // pred_fallthru
          _
      $region12: #{tpu_custom_call.1} parent=5 // pred_fallthru
        _
      %p248 = scmp.lt.s32.totalorder %s19, 2
      // Predicated region
      $region29: #{tpu_custom_call.1} parent=5 // pred_check
        %p249 = pneg %p248
      $region30: #{tpu_custom_call.1} parent=5 // pred_check_branch
        %251 = sbr.rel (%p249) target = $region32
      $region31: #{tpu_custom_call.1} parent=5 // pred_region
        // Predicated region
        $region33: #{tpu_custom_call.1} parent=31 // pred_check
          %p252 = pneg %p51
        $region34: #{tpu_custom_call.1} parent=31 // pred_check_branch
          %254 = sbr.rel (%p252) target = $region36
        $region35: #{tpu_custom_call.1} parent=31 // pred_region
          %s255 = sand.u32 %s41, 1
          %s256 = scalar_lea.sflag [#allocation3], %s255
          %s257 = sand.u32 %s41, 1
          %s258 = smul.addr %s257, 4
          %s259 = scalar_lea.vmem [#allocation2], %s258
          %261 = vsyncadd %s256, 0
          %s262 = smul.addr %s26, 4
          %s263 = scalar_lea.hbm %s0, %s262
          %s265 = sshll.u32 %s263, 4
          %s266 = int_to_ptr.hbm [resolvable:$true] %s265
          %s267 = sshll.u32 %s259, 4
          %s268 = int_to_ptr.vmem [resolvable:$true] %s267
          %270 = dma.hbm_to_vmem [thread:$0]  %s266, 64, %s268, %s256
        $region36: #{tpu_custom_call.1} parent=31 // pred_fallthru
          _
      $region32: #{tpu_custom_call.1} parent=5 // pred_fallthru
        _
      %p271 = scmp.le.s32.totalorder 1, %s19
      %p272 = scmp.lt.s32.totalorder %s19, 3
      %p273 = pnand %p271, %p272
      %p274 = pneg %p273
      // Predicated region
      $region37: #{tpu_custom_call.1} parent=5 // pred_check
        _
      $region38: #{tpu_custom_call.1} parent=5 // pred_check_branch
        %276 = sbr.rel (%p273) target = $region40
      $region39: #{tpu_custom_call.1} parent=5 // pred_region
        %s277 = ssub.s32 %s19, 1
        %s278 = sand.u32 %s44, 1
        %s279 = scalar_lea.sflag [#allocation3], %s278
        %s280 = sand.u32 %s44, 1
        %s281 = smul.addr %s280, 4
        %s282 = scalar_lea.vmem [#allocation2], %s281
        // Predicated region
        $region41: #{tpu_custom_call.1} parent=39 // pred_check
          %p283 = pneg %p57
        $region42: #{tpu_custom_call.1} parent=39 // pred_check_branch
          %285 = sbr.rel (%p283) target = $region44
        $region43: #{tpu_custom_call.1} parent=39 // pred_region
          %287 = dma.done %s279, 64
        $region44: #{tpu_custom_call.1} parent=39 // pred_fallthru
          _
        // Predicated region
        $region45: #{tpu_custom_call.1} parent=39 // pred_check
          %p288 = pneg %p83
        $region46: #{tpu_custom_call.1} parent=39 // pred_check_branch
          %290 = sbr.rel (%p288) target = $region48
        $region47: #{tpu_custom_call.1} parent=39 // pred_region
          %292 = dma.done [#allocation6], 4096
        $region48: #{tpu_custom_call.1} parent=39 // pred_fallthru
          _
        // Predicated region
        $region49: #{tpu_custom_call.1} parent=39 // pred_check
          %p293 = pneg %p109
        $region50: #{tpu_custom_call.1} parent=39 // pred_check_branch
          %295 = sbr.rel (%p293) target = $region52
        $region51: #{tpu_custom_call.1} parent=39 // pred_region
          %297 = dma.done [#allocation6], 64
        $region52: #{tpu_custom_call.1} parent=39 // pred_fallthru
          _
        // Predicated region
        $region53: #{tpu_custom_call.1} parent=39 // pred_check
          %p298 = pneg %p135
        $region54: #{tpu_custom_call.1} parent=39 // pred_check_branch
          %300 = sbr.rel (%p298) target = $region56
        $region55: #{tpu_custom_call.1} parent=39 // pred_region
          %302 = dma.done [#allocation9], 4096
        $region56: #{tpu_custom_call.1} parent=39 // pred_fallthru
          _
        %s303 = sand.u32 %s44, 1
        %s304 = scalar_lea.sflag [#allocation3], %s303
        %s305 = sand.u32 %s44, 1
        %s306 = smul.addr %s305, 4
        %s307 = scalar_lea.vmem [#allocation2], %s306
        %p308 = pneg %p57
        %p309 = pneg %p54
        %p310 = pneg %p83
        %p311 = pneg %p80
        %p312 = pneg %p109
        %p313 = pneg %p106
        %p314 = pneg %p135
        %p315 = pneg %p132
        %p316 = pneg %p156
        %p317 = pneg %p153
        %p318 = pneg %p182
        %p319 = pneg %p179
        %s320 = sand.u32 %s169, 1
        %s321 = scalar_lea.sflag [#allocation4], %s320
        %s322 = sand.u32 %s169, 1
        %s323 = smul.addr %s322, 8
        %s324 = scalar_lea.vmem [#allocation10], %s323
        %s325 = smul.u32 4, %s29
        %s326 = smul.u32 4, %s29
        %s327 = smul.u32 64, %s29
        %p328 = scmp.eq.s32.totalorder %s29, 0
        // Predicated region
        $region57: #{tpu_custom_call.1} parent=39 // pred_check
          %p329 = pneg %p328
        $region58: #{tpu_custom_call.1} parent=39 // pred_check_branch
          %331 = sbr.rel (%p329) target = $region60
        $region59: #{tpu_custom_call.1} parent=39 // pred_region
          %332 = vst [vmem:[%s324] sm:$0xff] 0.0
        $region60: #{tpu_custom_call.1} parent=39 // pred_fallthru
          _
        %v333 = vld [vmem:[%s282] sm:$0xf]
        %v334 = vld [vmem:[#allocation5] sm:$0xff]
        %v335 = vld [vmem:[#allocation5 + $0x8] sm:$0xff]
        %v336 = vld [vmem:[#allocation5 + $0x10] sm:$0xff]
        %v337 = vld [vmem:[#allocation5 + $0x18] sm:$0xff]
        %v338 = vld [vmem:[#allocation5 + $0x20] sm:$0xff]
        %v339 = vld [vmem:[#allocation5 + $0x28] sm:$0xff]
        %v340 = vld [vmem:[#allocation5 + $0x30] sm:$0xff]
        %v341 = vld [vmem:[#allocation5 + $0x38] sm:$0xff]
        %v342 = vld [vmem:[#allocation5 + $0x40] sm:$0xff]
        %v343 = vld [vmem:[#allocation5 + $0x48] sm:$0xff]
        %v344 = vld [vmem:[#allocation5 + $0x50] sm:$0xff]
        %v345 = vld [vmem:[#allocation5 + $0x58] sm:$0xff]
        %v346 = vld [vmem:[#allocation5 + $0x60] sm:$0xff]
        %v347 = vld [vmem:[#allocation5 + $0x68] sm:$0xff]
        %v348 = vld [vmem:[#allocation5 + $0x70] sm:$0xff]
        %v349 = vld [vmem:[#allocation5 + $0x78] sm:$0xff]
        %v350 = vld [vmem:[#allocation5 + $0x80] sm:$0xff]
        %v351 = vld [vmem:[#allocation5 + $0x88] sm:$0xff]
        %v352 = vld [vmem:[#allocation5 + $0x90] sm:$0xff]
        %v353 = vld [vmem:[#allocation5 + $0x98] sm:$0xff]
        %v354 = vld [vmem:[#allocation5 + $0xa0] sm:$0xff]
        %v355 = vld [vmem:[#allocation5 + $0xa8] sm:$0xff]
        %v356 = vld [vmem:[#allocation5 + $0xb0] sm:$0xff]
        %v357 = vld [vmem:[#allocation5 + $0xb8] sm:$0xff]
        %v358 = vld [vmem:[#allocation5 + $0xc0] sm:$0xff]
        %v359 = vld [vmem:[#allocation5 + $0xc8] sm:$0xff]
        %v360 = vld [vmem:[#allocation5 + $0xd0] sm:$0xff]
        %v361 = vld [vmem:[#allocation5 + $0xd8] sm:$0xff]
        %v362 = vld [vmem:[#allocation5 + $0xe0] sm:$0xff]
        %v363 = vld [vmem:[#allocation5 + $0xe8] sm:$0xff]
        %v364 = vld [vmem:[#allocation5 + $0xf0] sm:$0xff]
        %v365 = vld [vmem:[#allocation5 + $0xf8] sm:$0xff]
        %v366 = vld [vmem:[#allocation7] sm:$0xf]
        %v368 = vperm.slane %v366, 0
        %v369 = vperm.slane %v366, 1
        %v370 = vperm.slane %v366, 2
        %v371 = vperm.slane %v366, 3
        %v408 = vunpack.c.l.b16 %v334
        %v409 = vunpack.c.h.b16 %v334
        %v410 = vunpack.c.l.b16 %v335
        %v411 = vunpack.c.h.b16 %v335
        %v412 = vunpack.c.l.b16 %v336
        %v413 = vunpack.c.h.b16 %v336
        %v414 = vunpack.c.l.b16 %v337
        %v415 = vunpack.c.h.b16 %v337
        %v416 = vunpack.c.l.b16 %v338
        %v417 = vunpack.c.h.b16 %v338
        %v418 = vunpack.c.l.b16 %v339
        %v419 = vunpack.c.h.b16 %v339
        %v420 = vunpack.c.l.b16 %v340
        %v421 = vunpack.c.h.b16 %v340
        %v422 = vunpack.c.l.b16 %v341
        %v423 = vunpack.c.h.b16 %v341
        %v424 = vunpack.c.l.b16 %v342
        %v425 = vunpack.c.h.b16 %v342
        %v426 = vunpack.c.l.b16 %v343
        %v427 = vunpack.c.h.b16 %v343
        %v428 = vunpack.c.l.b16 %v344
        %v429 = vunpack.c.h.b16 %v344
        %v430 = vunpack.c.l.b16 %v345
        %v431 = vunpack.c.h.b16 %v345
        %v432 = vunpack.c.l.b16 %v346
        %v433 = vunpack.c.h.b16 %v346
        %v434 = vunpack.c.l.b16 %v347
        %v435 = vunpack.c.h.b16 %v347
        %v436 = vunpack.c.l.b16 %v348
        %v437 = vunpack.c.h.b16 %v348
        %v438 = vunpack.c.l.b16 %v349
        %v439 = vunpack.c.h.b16 %v349
        %v440 = vunpack.c.l.b16 %v350
        %v441 = vunpack.c.h.b16 %v350
        %v442 = vunpack.c.l.b16 %v351
        %v443 = vunpack.c.h.b16 %v351
        %v444 = vunpack.c.l.b16 %v352
        %v445 = vunpack.c.h.b16 %v352
        %v446 = vunpack.c.l.b16 %v353
        %v447 = vunpack.c.h.b16 %v353
        %v448 = vunpack.c.l.b16 %v354
        %v449 = vunpack.c.h.b16 %v354
        %v450 = vunpack.c.l.b16 %v355
        %v451 = vunpack.c.h.b16 %v355
        %v452 = vunpack.c.l.b16 %v356
        %v453 = vunpack.c.h.b16 %v356
        %v454 = vunpack.c.l.b16 %v357
        %v455 = vunpack.c.h.b16 %v357
        %v456 = vunpack.c.l.b16 %v358
        %v457 = vunpack.c.h.b16 %v358
        %v458 = vunpack.c.l.b16 %v359
        %v459 = vunpack.c.h.b16 %v359
        %v460 = vunpack.c.l.b16 %v360
        %v461 = vunpack.c.h.b16 %v360
        %v462 = vunpack.c.l.b16 %v361
        %v463 = vunpack.c.h.b16 %v361
        %v464 = vunpack.c.l.b16 %v362
        %v465 = vunpack.c.h.b16 %v362
        %v466 = vunpack.c.l.b16 %v363
        %v467 = vunpack.c.h.b16 %v363
        %v468 = vunpack.c.l.b16 %v364
        %v469 = vunpack.c.h.b16 %v364
        %v470 = vunpack.c.l.b16 %v365
        %v471 = vunpack.c.h.b16 %v365
        %v472 = vpack.c.b16 %v412, %v408
        %v473 = vpack.c.b16 %v413, %v409
        %v474 = vpack.c.b16 %v414, %v410
        %v475 = vpack.c.b16 %v415, %v411
        %v476 = vpack.c.b16 %v420, %v416
        %v477 = vpack.c.b16 %v421, %v417
        %v478 = vpack.c.b16 %v422, %v418
        %v479 = vpack.c.b16 %v423, %v419
        %v480 = vpack.c.b16 %v428, %v424
        %v481 = vpack.c.b16 %v429, %v425
        %v482 = vpack.c.b16 %v430, %v426
        %v483 = vpack.c.b16 %v431, %v427
        %v484 = vpack.c.b16 %v436, %v432
        %v485 = vpack.c.b16 %v437, %v433
        %v486 = vpack.c.b16 %v438, %v434
        %v487 = vpack.c.b16 %v439, %v435
        %v488 = vpack.c.b16 %v444, %v440
        %v489 = vpack.c.b16 %v445, %v441
        %v490 = vpack.c.b16 %v446, %v442
        %v491 = vpack.c.b16 %v447, %v443
        %v492 = vpack.c.b16 %v452, %v448
        %v493 = vpack.c.b16 %v453, %v449
        %v494 = vpack.c.b16 %v454, %v450
        %v495 = vpack.c.b16 %v455, %v451
        %v496 = vpack.c.b16 %v460, %v456
        %v497 = vpack.c.b16 %v461, %v457
        %v498 = vpack.c.b16 %v462, %v458
        %v499 = vpack.c.b16 %v463, %v459
        %v500 = vpack.c.b16 %v468, %v464
        %v501 = vpack.c.b16 %v469, %v465
        %v502 = vpack.c.b16 %v470, %v466
        %v503 = vpack.c.b16 %v471, %v467
        %536 = vmatpush.bf16.msra.mxu0 %v500
        %537 = vmatpush.bf16.msra.mxu0 %v496
        %538 = vmatpush.bf16.msra.mxu0 %v492
        %539 = vmatpush.bf16.msra.mxu0 %v488
        %540 = vmatpush.bf16.msra.mxu0 %v484
        %541 = vmatpush.bf16.msra.mxu0 %v480
        %542 = vmatpush.bf16.msra.mxu0 %v476
        %543 = vmatpush.bf16.msra.mxu0 %v472
        %544 = vmatmul.bf16.gmra.mxu0 %v333
        %v545 = vpop.f32.mrf.mxu0
        %v546 = vadd.f32 %v368, %v545
        %v547 = vpop.f32.mrf.mxu0
        %548 = vdwg.mxu0
        %549 = vmatpush.bf16.msra.mxu0 %v501
        %550 = vmatpush.bf16.msra.mxu0 %v497
        %551 = vmatpush.bf16.msra.mxu0 %v493
        %552 = vmatpush.bf16.msra.mxu0 %v489
        %553 = vmatpush.bf16.msra.mxu0 %v485
        %554 = vmatpush.bf16.msra.mxu0 %v481
        %555 = vmatpush.bf16.msra.mxu0 %v477
        %556 = vmatpush.bf16.msra.mxu0 %v473
        %557 = vmatmul.bf16.gmra.mxu0 %v333
        %v558 = vpop.f32.mrf.mxu0
        %v559 = vadd.f32 %v369, %v558
        %v560 = vpop.f32.mrf.mxu0
        %561 = vdwg.mxu0
        %562 = vmatpush.bf16.msra.mxu0 %v502
        %563 = vmatpush.bf16.msra.mxu0 %v498
        %564 = vmatpush.bf16.msra.mxu0 %v494
        %565 = vmatpush.bf16.msra.mxu0 %v490
        %566 = vmatpush.bf16.msra.mxu0 %v486
        %567 = vmatpush.bf16.msra.mxu0 %v482
        %568 = vmatpush.bf16.msra.mxu0 %v478
        %569 = vmatpush.bf16.msra.mxu0 %v474
        %570 = vmatmul.bf16.gmra.mxu0 %v333
        %v571 = vpop.f32.mrf.mxu0
        %v572 = vadd.f32 %v370, %v571
        %v573 = vpop.f32.mrf.mxu0
        %574 = vdwg.mxu0
        %575 = vmatpush.bf16.msra.mxu0 %v503
        %576 = vmatpush.bf16.msra.mxu0 %v499
        %577 = vmatpush.bf16.msra.mxu0 %v495
        %578 = vmatpush.bf16.msra.mxu0 %v491
        %579 = vmatpush.bf16.msra.mxu0 %v487
        %580 = vmatpush.bf16.msra.mxu0 %v483
        %581 = vmatpush.bf16.msra.mxu0 %v479
        %582 = vmatpush.bf16.msra.mxu0 %v475
        %583 = vmatmul.bf16.gmra.mxu0 %v333
        %v584 = vpop.f32.mrf.mxu0
        %v585 = vadd.f32 %v371, %v584
        %v586 = vpop.f32.mrf.mxu0
        %587 = vdwg.mxu0
        %v588 = vmul.f32 %v546, 0.5
        %v589 = vmul.f32 %v559, 0.5
        %v590 = vmul.f32 %v572, 0.5
        %v591 = vmul.f32 %v585, 0.5
        %v592 = vmul.f32 %v546, 0.70710677
        %v593 = vmul.f32 %v559, 0.70710677
        %v594 = vmul.f32 %v572, 0.70710677
        %v595 = vmul.f32 %v585, 0.70710677
        %v596 = vmul.f32 %v592, %v592
        %v597 = vmin.f32 16.0, %v596
        %v598 = vmul.f32 %v597, 2.1237322e-06
        %v599 = vadd.f32 %v598, 0.00028619796
        %v600 = vmul.f32 %v597, %v599
        %v601 = vadd.f32 %v600, 0.0036580483
        %v602 = vmul.f32 %v597, %v601
        %v603 = vadd.f32 %v602, 0.05243302
        %v604 = vmul.f32 %v597, %v603
        %v605 = vadd.f32 %v604, 0.18741608
        %v606 = vmul.f32 %v597, %v605
        %v607 = vadd.f32 %v606, 1.1283791
        %v608 = vmul.f32 %v592, %v607
        %v609 = vmul.f32 %v597, 3.8918573e-05
        %v610 = vadd.f32 %v609, 0.001143296
        %v611 = vmul.f32 %v597, %v610
        %v612 = vadd.f32 %v611, 0.014752088
        %v613 = vmul.f32 %v597, %v612
        %v614 = vadd.f32 %v613, 0.112945676
        %v615 = vmul.f32 %v597, %v614
        %v616 = vadd.f32 %v615, 0.4994258
        %v617 = vmul.f32 %v597, %v616
        %v618 = vadd.f32 %v617, 1.0
        %v619 = vrcp.pop %v618
        %v620 = vmul.f32 %v618, %v619
        %v621 = vsub.f32 1.0, %v620
        %v622 = vmul.f32 %v619, %v621
        %v623 = vadd.f32 %v619, %v622
        %vm624 = vweird.f32 %v618
        %vm625 = vweird.f32 %v619
        %vm626 = vmor %vm624, %vm625
        %v627 = vsel %vm626, %v619, %v623
        %v628 = vand.u32 2147483647, %v618
        %vm629 = vcmp.eq.f32.partialorder %v628, 8.507059e+37
        %v630 = vand.u32 %v618, 2147483648
        %v631 = vor.u32 1.1754944e-38, %v630
        %v632 = vsel %vm629, %v631, %v627
        %v633 = vmul.f32 %v608, %v632
        %v634 = vmin.f32 %v633, 1.0
        %v635 = vmax.f32 %v634, -1.0
        %v636 = vmul.f32 %v593, %v593
        %v637 = vmin.f32 16.0, %v636
        %v638 = vmul.f32 %v637, 2.1237322e-06
        %v639 = vadd.f32 %v638, 0.00028619796
        %v640 = vmul.f32 %v637, %v639
        %v641 = vadd.f32 %v640, 0.0036580483
        %v642 = vmul.f32 %v637, %v641
        %v643 = vadd.f32 %v642, 0.05243302
        %v644 = vmul.f32 %v637, %v643
        %v645 = vadd.f32 %v644, 0.18741608
        %v646 = vmul.f32 %v637, %v645
        %v647 = vadd.f32 %v646, 1.1283791
        %v648 = vmul.f32 %v593, %v647
        %v649 = vmul.f32 %v637, 3.8918573e-05
        %v650 = vadd.f32 %v649, 0.001143296
        %v651 = vmul.f32 %v637, %v650
        %v652 = vadd.f32 %v651, 0.014752088
        %v653 = vmul.f32 %v637, %v652
        %v654 = vadd.f32 %v653, 0.112945676
        %v655 = vmul.f32 %v637, %v654
        %v656 = vadd.f32 %v655, 0.4994258
        %v657 = vmul.f32 %v637, %v656
        %v658 = vadd.f32 %v657, 1.0
        %v659 = vrcp.pop %v658
        %v660 = vmul.f32 %v658, %v659
        %v661 = vsub.f32 1.0, %v660
        %v662 = vmul.f32 %v659, %v661
        %v663 = vadd.f32 %v659, %v662
        %vm664 = vweird.f32 %v658
        %vm665 = vweird.f32 %v659
        %vm666 = vmor %vm664, %vm665
        %v667 = vsel %vm666, %v659, %v663
        %v668 = vand.u32 2147483647, %v658
        %vm669 = vcmp.eq.f32.partialorder %v668, 8.507059e+37
        %v670 = vand.u32 %v658, 2147483648
        %v671 = vor.u32 1.1754944e-38, %v670
        %v672 = vsel %vm669, %v671, %v667
        %v673 = vmul.f32 %v648, %v672
        %v674 = vmin.f32 %v673, 1.0
        %v675 = vmax.f32 %v674, -1.0
        %v676 = vmul.f32 %v594, %v594
        %v677 = vmin.f32 16.0, %v676
        %v678 = vmul.f32 %v677, 2.1237322e-06
        %v679 = vadd.f32 %v678, 0.00028619796
        %v680 = vmul.f32 %v677, %v679
        %v681 = vadd.f32 %v680, 0.0036580483
        %v682 = vmul.f32 %v677, %v681
        %v683 = vadd.f32 %v682, 0.05243302
        %v684 = vmul.f32 %v677, %v683
        %v685 = vadd.f32 %v684, 0.18741608
        %v686 = vmul.f32 %v677, %v685
        %v687 = vadd.f32 %v686, 1.1283791
        %v688 = vmul.f32 %v594, %v687
        %v689 = vmul.f32 %v677, 3.8918573e-05
        %v690 = vadd.f32 %v689, 0.001143296
        %v691 = vmul.f32 %v677, %v690
        %v692 = vadd.f32 %v691, 0.014752088
        %v693 = vmul.f32 %v677, %v692
        %v694 = vadd.f32 %v693, 0.112945676
        %v695 = vmul.f32 %v677, %v694
        %v696 = vadd.f32 %v695, 0.4994258
        %v697 = vmul.f32 %v677, %v696
        %v698 = vadd.f32 %v697, 1.0
        %v699 = vrcp.pop %v698
        %v700 = vmul.f32 %v698, %v699
        %v701 = vsub.f32 1.0, %v700
        %v702 = vmul.f32 %v699, %v701
        %v703 = vadd.f32 %v699, %v702
        %vm704 = vweird.f32 %v698
        %vm705 = vweird.f32 %v699
        %vm706 = vmor %vm704, %vm705
        %v707 = vsel %vm706, %v699, %v703
        %v708 = vand.u32 2147483647, %v698
        %vm709 = vcmp.eq.f32.partialorder %v708, 8.507059e+37
        %v710 = vand.u32 %v698, 2147483648
        %v711 = vor.u32 1.1754944e-38, %v710
        %v712 = vsel %vm709, %v711, %v707
        %v713 = vmul.f32 %v688, %v712
        %v714 = vmin.f32 %v713, 1.0
        %v715 = vmax.f32 %v714, -1.0
        %v716 = vmul.f32 %v595, %v595
        %v717 = vmin.f32 16.0, %v716
        %v718 = vmul.f32 %v717, 2.1237322e-06
        %v719 = vadd.f32 %v718, 0.00028619796
        %v720 = vmul.f32 %v717, %v719
        %v721 = vadd.f32 %v720, 0.0036580483
        %v722 = vmul.f32 %v717, %v721
        %v723 = vadd.f32 %v722, 0.05243302
        %v724 = vmul.f32 %v717, %v723
        %v725 = vadd.f32 %v724, 0.18741608
        %v726 = vmul.f32 %v717, %v725
        %v727 = vadd.f32 %v726, 1.1283791
        %v728 = vmul.f32 %v595, %v727
        %v729 = vmul.f32 %v717, 3.8918573e-05
        %v730 = vadd.f32 %v729, 0.001143296
        %v731 = vmul.f32 %v717, %v730
        %v732 = vadd.f32 %v731, 0.014752088
        %v733 = vmul.f32 %v717, %v732
        %v734 = vadd.f32 %v733, 0.112945676
        %v735 = vmul.f32 %v717, %v734
        %v736 = vadd.f32 %v735, 0.4994258
        %v737 = vmul.f32 %v717, %v736
        %v738 = vadd.f32 %v737, 1.0
        %v739 = vrcp.pop %v738
        %v740 = vmul.f32 %v738, %v739
        %v741 = vsub.f32 1.0, %v740
        %v742 = vmul.f32 %v739, %v741
        %v743 = vadd.f32 %v739, %v742
        %vm744 = vweird.f32 %v738
        %vm745 = vweird.f32 %v739
        %vm746 = vmor %vm744, %vm745
        %v747 = vsel %vm746, %v739, %v743
        %v748 = vand.u32 2147483647, %v738
        %vm749 = vcmp.eq.f32.partialorder %v748, 8.507059e+37
        %v750 = vand.u32 %v738, 2147483648
        %v751 = vor.u32 1.1754944e-38, %v750
        %v752 = vsel %vm749, %v751, %v747
        %v753 = vmul.f32 %v728, %v752
        %v754 = vmin.f32 %v753, 1.0
        %v755 = vmax.f32 %v754, -1.0
        %v756 = vadd.f32 %v635, 1.0
        %v757 = vadd.f32 %v675, 1.0
        %v758 = vadd.f32 %v715, 1.0
        %v759 = vadd.f32 %v755, 1.0
        %v760 = vmul.f32 %v588, %v756
        %v761 = vmul.f32 %v589, %v757
        %v762 = vmul.f32 %v590, %v758
        %v763 = vmul.f32 %v591, %v759
        %v764 = vld [vmem:[%s324] sm:$0xff]
        %v765 = vpack.c.bf16 %v760, %v760
        %v766 = vpack.c.bf16 %v761, %v761
        %v767 = vpack.c.bf16 %v762, %v762
        %v768 = vpack.c.bf16 %v763, %v763
        %v769 = vld [vmem:[#allocation8] sm:$0xf]
        %v770 = vld [vmem:[#allocation8 + $0x4] sm:$0xf]
        %v771 = vld [vmem:[#allocation8 + $0x8] sm:$0xf]
        %v772 = vld [vmem:[#allocation8 + $0xc] sm:$0xf]
        %v773 = vld [vmem:[#allocation8 + $0x10] sm:$0xf]
        %v774 = vld [vmem:[#allocation8 + $0x14] sm:$0xf]
        %v775 = vld [vmem:[#allocation8 + $0x18] sm:$0xf]
        %v776 = vld [vmem:[#allocation8 + $0x1c] sm:$0xf]
        %v777 = vld [vmem:[#allocation8 + $0x20] sm:$0xf]
        %v778 = vld [vmem:[#allocation8 + $0x24] sm:$0xf]
        %v779 = vld [vmem:[#allocation8 + $0x28] sm:$0xf]
        %v780 = vld [vmem:[#allocation8 + $0x2c] sm:$0xf]
        %v781 = vld [vmem:[#allocation8 + $0x30] sm:$0xf]
        %v782 = vld [vmem:[#allocation8 + $0x34] sm:$0xf]
        %v783 = vld [vmem:[#allocation8 + $0x38] sm:$0xf]
        %v784 = vld [vmem:[#allocation8 + $0x3c] sm:$0xf]
        %v785 = vld [vmem:[#allocation8 + $0x40] sm:$0xf]
        %v786 = vld [vmem:[#allocation8 + $0x44] sm:$0xf]
        %v787 = vld [vmem:[#allocation8 + $0x48] sm:$0xf]
        %v788 = vld [vmem:[#allocation8 + $0x4c] sm:$0xf]
        %v789 = vld [vmem:[#allocation8 + $0x50] sm:$0xf]
        %v790 = vld [vmem:[#allocation8 + $0x54] sm:$0xf]
        %v791 = vld [vmem:[#allocation8 + $0x58] sm:$0xf]
        %v792 = vld [vmem:[#allocation8 + $0x5c] sm:$0xf]
        %v793 = vld [vmem:[#allocation8 + $0x60] sm:$0xf]
        %v794 = vld [vmem:[#allocation8 + $0x64] sm:$0xf]
        %v795 = vld [vmem:[#allocation8 + $0x68] sm:$0xf]
        %v796 = vld [vmem:[#allocation8 + $0x6c] sm:$0xf]
        %v797 = vld [vmem:[#allocation8 + $0x70] sm:$0xf]
        %v798 = vld [vmem:[#allocation8 + $0x74] sm:$0xf]
        %v799 = vld [vmem:[#allocation8 + $0x78] sm:$0xf]
        %v800 = vld [vmem:[#allocation8 + $0x7c] sm:$0xf]
        %v801 = vld [vmem:[#allocation8 + $0x80] sm:$0xf]
        %v802 = vld [vmem:[#allocation8 + $0x84] sm:$0xf]
        %v803 = vld [vmem:[#allocation8 + $0x88] sm:$0xf]
        %v804 = vld [vmem:[#allocation8 + $0x8c] sm:$0xf]
        %v805 = vld [vmem:[#allocation8 + $0x90] sm:$0xf]
        %v806 = vld [vmem:[#allocation8 + $0x94] sm:$0xf]
        %v807 = vld [vmem:[#allocation8 + $0x98] sm:$0xf]
        %v808 = vld [vmem:[#allocation8 + $0x9c] sm:$0xf]
        %v809 = vld [vmem:[#allocation8 + $0xa0] sm:$0xf]
        %v810 = vld [vmem:[#allocation8 + $0xa4] sm:$0xf]
        %v811 = vld [vmem:[#allocation8 + $0xa8] sm:$0xf]
        %v812 = vld [vmem:[#allocation8 + $0xac] sm:$0xf]
        %v813 = vld [vmem:[#allocation8 + $0xb0] sm:$0xf]
        %v814 = vld [vmem:[#allocation8 + $0xb4] sm:$0xf]
        %v815 = vld [vmem:[#allocation8 + $0xb8] sm:$0xf]
        %v816 = vld [vmem:[#allocation8 + $0xbc] sm:$0xf]
        %v817 = vld [vmem:[#allocation8 + $0xc0] sm:$0xf]
        %v818 = vld [vmem:[#allocation8 + $0xc4] sm:$0xf]
        %v819 = vld [vmem:[#allocation8 + $0xc8] sm:$0xf]
        %v820 = vld [vmem:[#allocation8 + $0xcc] sm:$0xf]
        %v821 = vld [vmem:[#allocation8 + $0xd0] sm:$0xf]
        %v822 = vld [vmem:[#allocation8 + $0xd4] sm:$0xf]
        %v823 = vld [vmem:[#allocation8 + $0xd8] sm:$0xf]
        %v824 = vld [vmem:[#allocation8 + $0xdc] sm:$0xf]
        %v825 = vld [vmem:[#allocation8 + $0xe0] sm:$0xf]
        %v826 = vld [vmem:[#allocation8 + $0xe4] sm:$0xf]
        %v827 = vld [vmem:[#allocation8 + $0xe8] sm:$0xf]
        %v828 = vld [vmem:[#allocation8 + $0xec] sm:$0xf]
        %v829 = vld [vmem:[#allocation8 + $0xf0] sm:$0xf]
        %v830 = vld [vmem:[#allocation8 + $0xf4] sm:$0xf]
        %v831 = vld [vmem:[#allocation8 + $0xf8] sm:$0xf]
        %v832 = vld [vmem:[#allocation8 + $0xfc] sm:$0xf]
        %v897 = vunpack.c.l.b16 %v769
        %v898 = vunpack.c.l.b16 %v770
        %v899 = vunpack.c.l.b16 %v771
        %v900 = vunpack.c.l.b16 %v772
        %v901 = vunpack.c.l.b16 %v773
        %v902 = vunpack.c.l.b16 %v774
        %v903 = vunpack.c.l.b16 %v775
        %v904 = vunpack.c.l.b16 %v776
        %v905 = vunpack.c.l.b16 %v777
        %v906 = vunpack.c.l.b16 %v778
        %v907 = vunpack.c.l.b16 %v779
        %v908 = vunpack.c.l.b16 %v780
        %v909 = vunpack.c.l.b16 %v781
        %v910 = vunpack.c.l.b16 %v782
        %v911 = vunpack.c.l.b16 %v783
        %v912 = vunpack.c.l.b16 %v784
        %v913 = vunpack.c.l.b16 %v785
        %v914 = vunpack.c.l.b16 %v786
        %v915 = vunpack.c.l.b16 %v787
        %v916 = vunpack.c.l.b16 %v788
        %v917 = vunpack.c.l.b16 %v789
        %v918 = vunpack.c.l.b16 %v790
        %v919 = vunpack.c.l.b16 %v791
        %v920 = vunpack.c.l.b16 %v792
        %v921 = vunpack.c.l.b16 %v793
        %v922 = vunpack.c.l.b16 %v794
        %v923 = vunpack.c.l.b16 %v795
        %v924 = vunpack.c.l.b16 %v796
        %v925 = vunpack.c.l.b16 %v797
        %v926 = vunpack.c.l.b16 %v798
        %v927 = vunpack.c.l.b16 %v799
        %v928 = vunpack.c.l.b16 %v800
        %v929 = vunpack.c.l.b16 %v801
        %v930 = vunpack.c.l.b16 %v802
        %v931 = vunpack.c.l.b16 %v803
        %v932 = vunpack.c.l.b16 %v804
        %v933 = vunpack.c.l.b16 %v805
        %v934 = vunpack.c.l.b16 %v806
        %v935 = vunpack.c.l.b16 %v807
        %v936 = vunpack.c.l.b16 %v808
        %v937 = vunpack.c.l.b16 %v809
        %v938 = vunpack.c.l.b16 %v810
        %v939 = vunpack.c.l.b16 %v811
        %v940 = vunpack.c.l.b16 %v812
        %v941 = vunpack.c.l.b16 %v813
        %v942 = vunpack.c.l.b16 %v814
        %v943 = vunpack.c.l.b16 %v815
        %v944 = vunpack.c.l.b16 %v816
        %v945 = vunpack.c.l.b16 %v817
        %v946 = vunpack.c.l.b16 %v818
        %v947 = vunpack.c.l.b16 %v819
        %v948 = vunpack.c.l.b16 %v820
        %v949 = vunpack.c.l.b16 %v821
        %v950 = vunpack.c.l.b16 %v822
        %v951 = vunpack.c.l.b16 %v823
        %v952 = vunpack.c.l.b16 %v824
        %v953 = vunpack.c.l.b16 %v825
        %v954 = vunpack.c.l.b16 %v826
        %v955 = vunpack.c.l.b16 %v827
        %v956 = vunpack.c.l.b16 %v828
        %v957 = vunpack.c.l.b16 %v829
        %v958 = vunpack.c.l.b16 %v830
        %v959 = vunpack.c.l.b16 %v831
        %v960 = vunpack.c.l.b16 %v832
        %v961 = vpack.c.b16 %v898, %v897
        %v962 = vpack.c.b16 %v900, %v899
        %v963 = vpack.c.b16 %v902, %v901
        %v964 = vpack.c.b16 %v904, %v903
        %v965 = vpack.c.b16 %v906, %v905
        %v966 = vpack.c.b16 %v908, %v907
        %v967 = vpack.c.b16 %v910, %v909
        %v968 = vpack.c.b16 %v912, %v911
        %v969 = vpack.c.b16 %v914, %v913
        %v970 = vpack.c.b16 %v916, %v915
        %v971 = vpack.c.b16 %v918, %v917
        %v972 = vpack.c.b16 %v920, %v919
        %v973 = vpack.c.b16 %v922, %v921
        %v974 = vpack.c.b16 %v924, %v923
        %v975 = vpack.c.b16 %v926, %v925
        %v976 = vpack.c.b16 %v928, %v927
        %v977 = vpack.c.b16 %v930, %v929
        %v978 = vpack.c.b16 %v932, %v931
        %v979 = vpack.c.b16 %v934, %v933
        %v980 = vpack.c.b16 %v936, %v935
        %v981 = vpack.c.b16 %v938, %v937
        %v982 = vpack.c.b16 %v940, %v939
        %v983 = vpack.c.b16 %v942, %v941
        %v984 = vpack.c.b16 %v944, %v943
        %v985 = vpack.c.b16 %v946, %v945
        %v986 = vpack.c.b16 %v948, %v947
        %v987 = vpack.c.b16 %v950, %v949
        %v988 = vpack.c.b16 %v952, %v951
        %v989 = vpack.c.b16 %v954, %v953
        %v990 = vpack.c.b16 %v956, %v955
        %v991 = vpack.c.b16 %v958, %v957
        %v992 = vpack.c.b16 %v960, %v959
        %1025 = vmatpush.bf16.msra.mxu0 %v968
        %1026 = vmatpush.bf16.msra.mxu0 %v967
        %1027 = vmatpush.bf16.msra.mxu0 %v966
        %1028 = vmatpush.bf16.msra.mxu0 %v965
        %1029 = vmatpush.bf16.msra.mxu0 %v964
        %1030 = vmatpush.bf16.msra.mxu0 %v963
        %1031 = vmatpush.bf16.msra.mxu0 %v962
        %1032 = vmatpush.bf16.msra.mxu0 %v961
        %1033 = vmatmul.bf16.gmra.mxu0 %v765
        %v1034 = vpop.f32.mrf.mxu0
        %v1035 = vadd.f32 0.0, %v1034
        %v1036 = vpop.f32.mrf.mxu0
        %1037 = vdwg.mxu0
        %1038 = vmatpush.bf16.msra.mxu0 %v976
        %1039 = vmatpush.bf16.msra.mxu0 %v975
        %1040 = vmatpush.bf16.msra.mxu0 %v974
        %1041 = vmatpush.bf16.msra.mxu0 %v973
        %1042 = vmatpush.bf16.msra.mxu0 %v972
        %1043 = vmatpush.bf16.msra.mxu0 %v971
        %1044 = vmatpush.bf16.msra.mxu0 %v970
        %1045 = vmatpush.bf16.msra.mxu0 %v969
        %1046 = vmatmul.bf16.gmra.mxu0 %v766
        %v1047 = vpop.f32.mrf.mxu0
        %v1048 = vadd.f32 %v1035, %v1047
        %v1049 = vpop.f32.mrf.mxu0
        %1050 = vdwg.mxu0
        %1051 = vmatpush.bf16.msra.mxu0 %v984
        %1052 = vmatpush.bf16.msra.mxu0 %v983
        %1053 = vmatpush.bf16.msra.mxu0 %v982
        %1054 = vmatpush.bf16.msra.mxu0 %v981
        %1055 = vmatpush.bf16.msra.mxu0 %v980
        %1056 = vmatpush.bf16.msra.mxu0 %v979
        %1057 = vmatpush.bf16.msra.mxu0 %v978
        %1058 = vmatpush.bf16.msra.mxu0 %v977
        %1059 = vmatmul.bf16.gmra.mxu0 %v767
        %v1060 = vpop.f32.mrf.mxu0
        %v1061 = vadd.f32 %v1048, %v1060
        %v1062 = vpop.f32.mrf.mxu0
        %1063 = vdwg.mxu0
        %1064 = vmatpush.bf16.msra.mxu0 %v992
        %1065 = vmatpush.bf16.msra.mxu0 %v991
        %1066 = vmatpush.bf16.msra.mxu0 %v990
        %1067 = vmatpush.bf16.msra.mxu0 %v989
        %1068 = vmatpush.bf16.msra.mxu0 %v988
        %1069 = vmatpush.bf16.msra.mxu0 %v987
        %1070 = vmatpush.bf16.msra.mxu0 %v986
        %1071 = vmatpush.bf16.msra.mxu0 %v985
        %1072 = vmatmul.bf16.gmra.mxu0 %v768
        %v1073 = vpop.f32.mrf.mxu0
        %v1074 = vadd.f32 %v1061, %v1073
        %v1075 = vpop.f32.mrf.mxu0
        %1076 = vdwg.mxu0
        %v1077 = vadd.f32 %v764, %v1074
        %1078 = vst [vmem:[%s324] sm:$0xff] %v1077
        // Predicated region
        $region61: #{tpu_custom_call.1} parent=39 // pred_check
          %p1079 = pneg %p328
        $region62: #{tpu_custom_call.1} parent=39 // pred_check_branch
          %1081 = sbr.rel (%p1079) target = $region64
        $region63: #{tpu_custom_call.1} parent=39 // pred_region
          %v1082 = vld [vmem:[%s324] sm:$0xff]
          %v1083 = vld [vmem:[%s4] sm:$0x1]
          %v1085 = vperm.slane %v1083, 0
          %v1087 = vadd.f32 %v1082, %v1085
          %1088 = vst [vmem:[%s324] sm:$0xff] %v1087
        $region64: #{tpu_custom_call.1} parent=39 // pred_fallthru
          _
        %s1089 = sand.u32 %s169, 1
        %s1090 = scalar_lea.sflag [#allocation4], %s1089
        %s1091 = sand.u32 %s169, 1
        %s1092 = smul.addr %s1091, 8
        %s1093 = scalar_lea.vmem [#allocation10], %s1092
        // Predicated region
        $region65: #{tpu_custom_call.1} parent=39 // pred_check
          %p1094 = pneg %p179
        $region66: #{tpu_custom_call.1} parent=39 // pred_check_branch
          %1096 = sbr.rel (%p1094) target = $region68
        $region67: #{tpu_custom_call.1} parent=39 // pred_region
          %1098 = vsyncadd %s1090, 0
          %s1099 = smul.addr %s28, 8
          %s1100 = scalar_lea.hbm %s5, %s1099
          %s1102 = sshll.u32 %s1093, 4
          %s1103 = int_to_ptr.vmem [resolvable:$true] %s1102
          %s1104 = sshll.u32 %s1100, 4
          %s1105 = int_to_ptr.hbm [resolvable:$true] %s1104
          %1107 = dma.vmem_to_hbm [thread:$0]  %s1103, 128, %s1105, %s1090
        $region68: #{tpu_custom_call.1} parent=39 // pred_fallthru
          _
      $region40: #{tpu_custom_call.1} parent=5 // pred_fallthru
        _
      %p1108 = scmp.le.s32.totalorder 2, %s19
      // Predicated region
      $region69: #{tpu_custom_call.1} parent=5 // pred_check
        %p1109 = pneg %p1108
      $region70: #{tpu_custom_call.1} parent=5 // pred_check_branch
        %1111 = sbr.rel (%p1109) target = $region72
      $region71: #{tpu_custom_call.1} parent=5 // pred_region
        %s1112 = ssub.s32 %s19, 2
        // Predicated region
        $region73: #{tpu_custom_call.1} parent=71 // pred_check
          %p1113 = pneg %p185
        $region74: #{tpu_custom_call.1} parent=71 // pred_check_branch
          %1115 = sbr.rel (%p1113) target = $region76
        $region75: #{tpu_custom_call.1} parent=71 // pred_region
          %s1116 = sand.u32 %s170, 1
          %s1117 = scalar_lea.sflag [#allocation4], %s1116
          %s1118 = sand.u32 %s170, 1
          %s1119 = smul.addr %s1118, 8
          %s1120 = scalar_lea.vmem [#allocation10], %s1119
          %1122 = dma.done %s1117, 128
        $region76: #{tpu_custom_call.1} parent=71 // pred_fallthru
          _
      $region72: #{tpu_custom_call.1} parent=5 // pred_fallthru
        _
    $region6: #{tpu_custom_call.1} parent=1 // loop_footer
      %s23 = sadd.s32 1, %s19
    $region7: #{tpu_custom_call.1} parent=1 // loop_footer_branch
      %18 = sbr.rel target = $region3
    $region8: #{tpu_custom_call.1} parent=1 // loop_exit
      _
    %1123 = vsyncpa [#allocation3], 1
    %s1124 = scalar_lea.sflag [#allocation3], 1
    %1125 = vsyncpa %s1124, 1
    %1126 = vsyncpa [#allocation6], 1
    %1127 = vsyncpa [#allocation9], 1
    %1128 = vsyncpa [#allocation4], 1
    %s1129 = scalar_lea.sflag [#allocation4], 1
    %1130 = vsyncpa %s1129, 1

</llo_original>
